<compile_context>
chip_gen: v7x
topology: tpu7x:2x2x1
jax: 0.10.0
libtpu: 0.0.40
codegen_flags: <defaults>
</compile_context>

<pallas_src>
import functools

import jax
import jax.numpy as jnp
from jax.experimental import pallas as pl
from jax.experimental.pallas import tpu as pltpu


def _round_up(n, m):
    return ((n + m - 1) // m) * m


def _cdiv(a, b):
    return -(-a // b)


def mlp_kernel(x_ref, w1_ref, b1_ref, w2_ref, b2_ref, w3_ref, b3_ref, o_ref):
    # --- Linear(in,512) with BatchNorm folded in: bf16 operands, f32 MXU accumulation ---
    h1 = jnp.dot(x_ref[...], w1_ref[...],
                 preferred_element_type=jnp.float32) + b1_ref[...]
    # ReLU in f32 (v5e VPU has no bf16 VALU), then cast so the (TB,512) intermediate that
    # lives in VMEM between matmuls is half-width.
    h1 = jnp.maximum(h1, 0.0).astype(jnp.bfloat16)

    # --- Linear(512, 14 [padded to 128]) + ReLU ---
    h2 = jnp.dot(h1, w2_ref[...],
                 preferred_element_type=jnp.float32) + b2_ref[...]
    h2 = jnp.maximum(h2, 0.0).astype(jnp.bfloat16)

    # --- Linear(14, out [padded to 128]) (lastlayer, no activation) ---
    out = jnp.dot(h2, w3_ref[...],
                  preferred_element_type=jnp.float32) + b3_ref[...]
    o_ref[...] = out.astype(o_ref.dtype)   # bf16 writeback (lane-dense, unmasked vst)


def _padded_k(in_dim):
    # Keep the layer-1 contraction dim small when input_dim is small (compute win on v5e,
    # 4x less x HBM traffic everywhere).  Sub-128 lane blocks are legal because the block
    # equals the full (padded) array dim.
    return _round_up(in_dim, 128) if in_dim > 128 else _round_up(in_dim, 16)


def prepare_params(params):
    """One-time pad/cast of the call-invariant pieces (hoisted out of the per-call path)."""
    gamma, beta, w1, b1, w2, b2, w3, b3 = params
    h1_dim, h2_dim = w2.shape
    out_dim = w3.shape[1]

    H1 = _round_up(h1_dim, 128)   # 512 already aligned
    H2 = _round_up(h2_dim, 128)   # 14  -> 128
    N = _round_up(out_dim, 128)   # out -> 128

    w2_p = jnp.zeros((H1, H2), jnp.bfloat16).at[:h1_dim, :h2_dim].set(w2.astype(jnp.bfloat16))
    b2_p = jnp.zeros((1, H2), jnp.float32).at[:, :h2_dim].set(
        b2.reshape(1, -1).astype(jnp.float32))
    w3_p = jnp.zeros((H2, N), jnp.bfloat16).at[:h2_dim, :out_dim].set(w3.astype(jnp.bfloat16))
    b3_p = jnp.zeros((1, N), jnp.float32).at[:, :out_dim].set(
        b3.reshape(1, -1).astype(jnp.float32))

    # w1/b1 stay f32 + unpadded: the BatchNorm fold is per-call (depends on batch stats) but
    # tiny (in_dim x 512), and fuses under jit.
    dyn = (gamma.reshape(1, -1).astype(jnp.float32),
           beta.reshape(1, -1).astype(jnp.float32),
           w1.astype(jnp.float32),
           b1.reshape(1, -1).astype(jnp.float32),
           w2_p, b2_p, w3_p, b3_p)
    return dyn, out_dim


@functools.partial(jax.jit, static_argnames=("out_dim", "block_b"))
def mlp_2hidden_forward(x, prepped, *, out_dim, block_b=1024):
    gamma, beta, w1, b1, w2_p, b2_p, w3_p, b3_p = prepped
    B, in_dim = x.shape
    h1_dim = w1.shape[1]
    H1, H2 = w2_p.shape
    N = w3_p.shape[1]
    K = _padded_k(in_dim)

    # ---- Batch tiling: multiples of 16 (bf16 sublane packing), sized to minimize padding ----
    n_tiles = max(1, _cdiv(B, block_b))
    TB = _round_up(_cdiv(B, n_tiles), 16)
    Bp = n_tiles * TB
    # VMEM budget (per TC): 2*(x tile + out tile) + resident weights.  For TB=1024, K<=128:
    # ~1.3 MiB -- comfortably under the 32 MiB scoped limit on every gen (v7x physical 64 MiB).

    # ---- BatchNorm1d stats over the REAL batch (f32, biased variance = training mode) ----
    xf = x.astype(jnp.float32)
    mean = jnp.mean(xf, axis=0, keepdims=True)
    var = jnp.mean(jnp.square(xf - mean), axis=0, keepdims=True)
    scale = gamma * jax.lax.rsqrt(var + 1e-5)        # (1, in_dim)
    shift = beta - mean * scale                      # (1, in_dim)

    # ---- Fold BN into layer 1 (removes the per-tile x*scale+shift work + two DMAs) ----
    w1f = w1 * scale.T                               # (in_dim, 512)
    b1f = b1 + shift @ w1                            # (1, 512)

    # ---- Zero-pad to lane-dense shapes; activations + weights in bf16 ----
    x_p = jnp.zeros((Bp, K), jnp.bfloat16).at[:B, :in_dim].set(xf.astype(jnp.bfloat16))
    w1_p = jnp.zeros((K, H1), jnp.bfloat16).at[:in_dim, :h1_dim].set(w1f.astype(jnp.bfloat16))
    b1_p = jnp.zeros((1, H1), jnp.float32).at[:, :h1_dim].set(b1f)

    resident = lambda i: (0, 0)   # weights/biases: DMA once, stay VMEM-resident across tiles

    out_p = pl.pallas_call(
        mlp_kernel,
        out_shape=jax.ShapeDtypeStruct((Bp, N), jnp.bfloat16),
        grid=(Bp // TB,),
        in_specs=[
            pl.BlockSpec((TB, K), lambda i: (i, 0)),   # x tile: pipelined over the batch
            pl.BlockSpec((K, H1), resident),           # w1 (BN folded)
            pl.BlockSpec((1, H1), resident),           # b1 (BN folded)
            pl.BlockSpec((H1, H2), resident),          # w2
            pl.BlockSpec((1, H2), resident),           # b2
            pl.BlockSpec((H2, N), resident),           # w3
            pl.BlockSpec((1, N), resident),            # b3
        ],
        out_specs=pl.BlockSpec((TB, N), lambda i: (i, 0)),
        compiler_params=pltpu.CompilerParams(
            dimension_semantics=("parallel",),          # shard batch tiles across TCs (v7x)
            vmem_limit_bytes=32 * 1024 * 1024,
        ),
    )(x_p, w1_p, b1_p, w2_p, b2_p, w3_p, b3_p)

    return out_p[:B, :out_dim]


def make_params(key, input_dim, output_dim):
    k1, k2, k3, k4, k5, k6 = jax.random.split(key, 6)
    # BatchNorm1d affine params (PyTorch init: gamma=1, beta=0); kept as (1, D) rows.
    gamma = jnp.ones((1, input_dim), jnp.float32)
    beta = jnp.zeros((1, input_dim), jnp.float32)
    # Linear weights stored as (in, out); deterministic small random init.
    w1 = jax.random.normal(k1, (input_dim, 512), jnp.float32) * 0.05
    b1 = jax.random.normal(k2, (1, 512), jnp.float32) * 0.05
    w2 = jax.random.normal(k3, (512, 14), jnp.float32) * 0.05
    b2 = jax.random.normal(k4, (1, 14), jnp.float32) * 0.05
    w3 = jax.random.normal(k5, (14, output_dim), jnp.float32) * 0.05
    b3 = jax.random.normal(k6, (1, output_dim), jnp.float32) * 0.05
    return (gamma, beta, w1, b1, w2, b2, w3, b3)


def reference_forward(x, params):
    gamma, beta, w1, b1, w2, b2, w3, b3 = params
    mean = jnp.mean(x, axis=0, keepdims=True)
    var = jnp.mean((x - mean) ** 2, axis=0, keepdims=True)
    x_bn = (x - mean) / jnp.sqrt(var + 1e-5) * gamma + beta
    h1 = jnp.maximum(x_bn @ w1 + b1, 0.0)
    h2 = jnp.maximum(h1 @ w2 + b2, 0.0)
    return h2 @ w3 + b3


if __name__ == "__main__":
    B, input_dim, output_dim = 8, 32, 10
    key = jax.random.PRNGKey(0)
    kx, kp = jax.random.split(key)
    x = jax.random.normal(kx, (B, input_dim), jnp.float32)
    params = make_params(kp, input_dim, output_dim)

    prepped, out_dim = prepare_params(params)
    out = mlp_2hidden_forward(x, prepped, out_dim=out_dim)
    out = jax.block_until_ready(out)

    ref = reference_forward(x, params)
    assert out.shape == (B, output_dim)
    # Tolerance accounts for bf16 activations/weights/output (f32 MXU accumulation)
    # vs the pure-f32 reference.
    err = jnp.max(jnp.abs(out.astype(jnp.float32) - ref))
    assert jnp.allclose(out.astype(jnp.float32), ref, atol=3e-2, rtol=3e-2), float(err)
    print("KERNEL_OK")
</pallas_src>

<mosaic_0001>
module attributes {stable_mosaic.version = 11 : i64} {
  func.func @mlp_kernel(%arg0: i32, %arg1: memref<16x32xbf16, #tpu.memory_space<vmem>>, %arg2: memref<32x512xbf16, #tpu.memory_space<vmem>>, %arg3: memref<1x512xf32, #tpu.memory_space<vmem>>, %arg4: memref<512x128xbf16, #tpu.memory_space<vmem>>, %arg5: memref<1x128xf32, #tpu.memory_space<vmem>>, %arg6: memref<128x128xbf16, #tpu.memory_space<vmem>>, %arg7: memref<1x128xf32, #tpu.memory_space<vmem>>, %arg8: memref<16x128xbf16, #tpu.memory_space<vmem>>) attributes {dimension_semantics = [#tpu.dimension_semantics<parallel>], iteration_bounds = array<i64: 1>, scalar_prefetch = 0 : i64, scratch_operands = 0 : i64, tpu.core_type = #tpu.core_type<tc>, window_params = [{transform_indices = @transform_0, window_bounds = array<i64: 16, 32>}, {pipeline_mode = #tpu.pipeline_mode<synchronous>, transform_indices = @transform_1, window_bounds = array<i64: 32, 512>}, {pipeline_mode = #tpu.pipeline_mode<synchronous>, transform_indices = @transform_2, window_bounds = array<i64: 1, 512>}, {pipeline_mode = #tpu.pipeline_mode<synchronous>, transform_indices = @transform_3, window_bounds = array<i64: 512, 128>}, {pipeline_mode = #tpu.pipeline_mode<synchronous>, transform_indices = @transform_4, window_bounds = array<i64: 1, 128>}, {pipeline_mode = #tpu.pipeline_mode<synchronous>, transform_indices = @transform_5, window_bounds = array<i64: 128, 128>}, {pipeline_mode = #tpu.pipeline_mode<synchronous>, transform_indices = @transform_6, window_bounds = array<i64: 1, 128>}, {transform_indices = @transform_7, window_bounds = array<i64: 16, 128>}]} {
    %c0 = arith.constant 0 : index
    %c0_0 = arith.constant 0 : index
    %0 = vector.load %arg1[%c0, %c0_0] : memref<16x32xbf16, #tpu.memory_space<vmem>>, vector<16x32xbf16>
    %c0_1 = arith.constant 0 : index
    %c0_2 = arith.constant 0 : index
    %1 = vector.load %arg2[%c0_1, %c0_2] : memref<32x512xbf16, #tpu.memory_space<vmem>>, vector<32x512xbf16>
    %cst = arith.constant dense<0.000000e+00> : vector<16x512xf32>
    %2 = tpu.matmul %0, %1, %cst {dimension_numbers = #tpu.dot_dimension_numbers<[1], [0], [0], [1], [0, 0, 1, 1], [], []>} : vector<16x32xbf16>, vector<32x512xbf16>, vector<16x512xf32> -> vector<16x512xf32>
    %c0_3 = arith.constant 0 : index
    %c0_4 = arith.constant 0 : index
    %3 = vector.load %arg3[%c0_3, %c0_4] : memref<1x512xf32, #tpu.memory_space<vmem>>, vector<1x512xf32>
    %4 = vector.broadcast %3 : vector<1x512xf32> to vector<16x512xf32>
    %5 = arith.addf %2, %4 : vector<16x512xf32>
    %cst_5 = arith.constant 0.000000e+00 : f32
    %6 = vector.broadcast %cst_5 : f32 to vector<16x512xf32>
    %7 = arith.maximumf %5, %6 : vector<16x512xf32>
    %8 = arith.truncf %7 : vector<16x512xf32> to vector<16x512xbf16>
    %c0_6 = arith.constant 0 : index
    %c0_7 = arith.constant 0 : index
    %9 = vector.load %arg4[%c0_6, %c0_7] : memref<512x128xbf16, #tpu.memory_space<vmem>>, vector<512x128xbf16>
    %cst_8 = arith.constant dense<0.000000e+00> : vector<16x128xf32>
    %10 = tpu.matmul %8, %9, %cst_8 {dimension_numbers = #tpu.dot_dimension_numbers<[1], [0], [0], [1], [0, 0, 1, 1], [], []>} : vector<16x512xbf16>, vector<512x128xbf16>, vector<16x128xf32> -> vector<16x128xf32>
    %c0_9 = arith.constant 0 : index
    %c0_10 = arith.constant 0 : index
    %11 = vector.load %arg5[%c0_9, %c0_10] : memref<1x128xf32, #tpu.memory_space<vmem>>, vector<1x128xf32>
    %12 = vector.broadcast %11 : vector<1x128xf32> to vector<16x128xf32>
    %13 = arith.addf %10, %12 : vector<16x128xf32>
    %cst_11 = arith.constant 0.000000e+00 : f32
    %14 = vector.broadcast %cst_11 : f32 to vector<16x128xf32>
    %15 = arith.maximumf %13, %14 : vector<16x128xf32>
    %16 = arith.truncf %15 : vector<16x128xf32> to vector<16x128xbf16>
    %c0_12 = arith.constant 0 : index
    %c0_13 = arith.constant 0 : index
    %17 = vector.load %arg6[%c0_12, %c0_13] : memref<128x128xbf16, #tpu.memory_space<vmem>>, vector<128x128xbf16>
    %cst_14 = arith.constant dense<0.000000e+00> : vector<16x128xf32>
    %18 = tpu.matmul %16, %17, %cst_14 {dimension_numbers = #tpu.dot_dimension_numbers<[1], [0], [0], [1], [0, 0, 1, 1], [], []>} : vector<16x128xbf16>, vector<128x128xbf16>, vector<16x128xf32> -> vector<16x128xf32>
    %c0_15 = arith.constant 0 : index
    %c0_16 = arith.constant 0 : index
    %19 = vector.load %arg7[%c0_15, %c0_16] : memref<1x128xf32, #tpu.memory_space<vmem>>, vector<1x128xf32>
    %20 = vector.broadcast %19 : vector<1x128xf32> to vector<16x128xf32>
    %21 = arith.addf %18, %20 : vector<16x128xf32>
    %22 = arith.truncf %21 : vector<16x128xf32> to vector<16x128xbf16>
    %c0_17 = arith.constant 0 : index
    %c0_18 = arith.constant 0 : index
    %23 = vector.load %arg8[%c0_17, %c0_18] : memref<16x128xbf16, #tpu.memory_space<vmem>>, vector<16x128xbf16>
    tpu.vector_store %arg8[%c0_17, %c0_18], %22 {strides = array<i32>} : memref<16x128xbf16, #tpu.memory_space<vmem>>, vector<16x128xbf16>,
    return
  }
  func.func @transform_0(%arg0: i32) -> (i32, i32) {
    %c0_i32 = arith.constant 0 : i32
    %c0_i32_0 = arith.constant 0 : i32
    return %arg0, %c0_i32 : i32, i32
  }
  func.func @transform_1(%arg0: i32) -> (i32, i32) {
    %c0_i32 = arith.constant 0 : i32
    %c0_i32_0 = arith.constant 0 : i32
    %c0_i32_1 = arith.constant 0 : i32
    return %c0_i32, %c0_i32_0 : i32, i32
  }
  func.func @transform_2(%arg0: i32) -> (i32, i32) {
    %c0_i32 = arith.constant 0 : i32
    %c0_i32_0 = arith.constant 0 : i32
    %c0_i32_1 = arith.constant 0 : i32
    return %c0_i32, %c0_i32_0 : i32, i32
  }
  func.func @transform_3(%arg0: i32) -> (i32, i32) {
    %c0_i32 = arith.constant 0 : i32
    %c0_i32_0 = arith.constant 0 : i32
    %c0_i32_1 = arith.constant 0 : i32
    return %c0_i32, %c0_i32_0 : i32, i32
  }
  func.func @transform_4(%arg0: i32) -> (i32, i32) {
    %c0_i32 = arith.constant 0 : i32
    %c0_i32_0 = arith.constant 0 : i32
    %c0_i32_1 = arith.constant 0 : i32
    return %c0_i32, %c0_i32_0 : i32, i32
  }
  func.func @transform_5(%arg0: i32) -> (i32, i32) {
    %c0_i32 = arith.constant 0 : i32
    %c0_i32_0 = arith.constant 0 : i32
    %c0_i32_1 = arith.constant 0 : i32
    return %c0_i32, %c0_i32_0 : i32, i32
  }
  func.func @transform_6(%arg0: i32) -> (i32, i32) {
    %c0_i32 = arith.constant 0 : i32
    %c0_i32_0 = arith.constant 0 : i32
    %c0_i32_1 = arith.constant 0 : i32
    return %c0_i32, %c0_i32_0 : i32, i32
  }
  func.func @transform_7(%arg0: i32) -> (i32, i32) {
    %c0_i32 = arith.constant 0 : i32
    %c0_i32_0 = arith.constant 0 : i32
    return %arg0, %c0_i32 : i32, i32
  }
}

</mosaic_0001>

<llo_original>
// kernel: mlp_2hidden_forward.1
$region0: #{mlp_2hidden_forward.1}
  #allocation0 [shape = 'u32[]', space=smem, size = 0x4, offset = 0x4, fixed_abs, tag = 'smem constant byte address 0x4 - core index']
  #allocation1 [shape = 'u32[144,128]{1,0:T(1,128)}', space=vmem, size = 0x12000, scoped, tag = 'internal scratch']
  %s0 = inlined_call_operand.vmem [shape: bf16[16,32], index: 0, kind: input, shape index: {}]
  %s1 = inlined_call_operand.vmem [shape: bf16[32,512], index: 1, kind: input, shape index: {}]
  %s2 = inlined_call_operand.vmem [shape: f32[1,512], index: 2, kind: input, shape index: {}]
  %s3 = inlined_call_operand.vmem [shape: bf16[512,128], index: 3, kind: input, shape index: {}]
  %s4 = inlined_call_operand.vmem [shape: f32[1,128], index: 4, kind: input, shape index: {}]
  %s5 = inlined_call_operand.hbm [shape: bf16[128,128], index: 5, kind: input, shape index: {}]
  %s6 = inlined_call_operand.vmem [shape: f32[1,128], index: 6, kind: input, shape index: {}]
  %s7 = inlined_call_operand.vmem [shape: bf16[16,128], index: 7, kind: output, shape index: {}]
  %s8 = sld [smem:[#allocation0]]
  $region42: #{mlp_2hidden_forward.1} parent=0
    _
  %s10 = ssub.s32 1, %s8
  %s11 = scalar_select 0, %s10, %s8
  $region1: #{mlp_2hidden_forward.1} parent=0
    #allocation2 [shape = 'u8[32768]{0}', space=vmem, size = 0x8000, scoped, tag = 'input window, operand 5, single buffered']
    #allocation3 [shape = 's32[1]{0}', space=sflag, size = 0x4, scoped, tag = 'scoped memory for mlp_2hidden_forward.1']
    %12 = vsyncpa [#allocation3], 0
    // Predicated region
    $region2: #{mlp_2hidden_forward.1} parent=1 // pred_check
      _
    $region3: #{mlp_2hidden_forward.1} parent=1 // pred_check_branch
      %14 = sbr.rel (0) target = $region5
    $region4: #{mlp_2hidden_forward.1} parent=1 // pred_region
      _
    $region5: #{mlp_2hidden_forward.1} parent=1 // pred_fallthru
      _
    // Predicated region
    $region6: #{mlp_2hidden_forward.1} parent=1 // pred_check
      _
    $region7: #{mlp_2hidden_forward.1} parent=1 // pred_check_branch
      %16 = sbr.rel (0) target = $region9
    $region8: #{mlp_2hidden_forward.1} parent=1 // pred_region
      _
    $region9: #{mlp_2hidden_forward.1} parent=1 // pred_fallthru
      _
    // Predicated region
    $region10: #{mlp_2hidden_forward.1} parent=1 // pred_check
      _
    $region11: #{mlp_2hidden_forward.1} parent=1 // pred_check_branch
      %18 = sbr.rel (0) target = $region13
    $region12: #{mlp_2hidden_forward.1} parent=1 // pred_region
      _
    $region13: #{mlp_2hidden_forward.1} parent=1 // pred_fallthru
      _
    // Predicated region
    $region14: #{mlp_2hidden_forward.1} parent=1 // pred_check
      _
    $region15: #{mlp_2hidden_forward.1} parent=1 // pred_check_branch
      %20 = sbr.rel (0) target = $region17
    $region16: #{mlp_2hidden_forward.1} parent=1 // pred_region
      _
    $region17: #{mlp_2hidden_forward.1} parent=1 // pred_fallthru
      _
    // Predicated region
    $region18: #{mlp_2hidden_forward.1} parent=1 // pred_check
      _
    $region19: #{mlp_2hidden_forward.1} parent=1 // pred_check_branch
      %22 = sbr.rel (0) target = $region21
    $region20: #{mlp_2hidden_forward.1} parent=1 // pred_region
      _
    $region21: #{mlp_2hidden_forward.1} parent=1 // pred_fallthru
      _
    // Predicated region
    $region22: #{mlp_2hidden_forward.1} parent=1 // pred_check
      _
    $region23: #{mlp_2hidden_forward.1} parent=1 // pred_check_branch
      %24 = sbr.rel (0) target = $region25
    $region24: #{mlp_2hidden_forward.1} parent=1 // pred_region
      %s26 = ssub.s32 1024, 1024
      %27 = vsyncadd [#allocation3], %s26
      %s28 = sshll.u32 [#allocation2], 4
      %s29 = int_to_ptr.vmem [resolvable:$true] %s28
      %34 = dma.hbm_to_vmem [thread:$0]  %s5, 1024, %s29, [#allocation3], 64, 64, 4
    $region25: #{mlp_2hidden_forward.1} parent=1 // pred_fallthru
      _
    // Predicated region
    $region26: #{mlp_2hidden_forward.1} parent=1 // pred_check
      _
    $region27: #{mlp_2hidden_forward.1} parent=1 // pred_check_branch
      %36 = sbr.rel (0) target = $region29
    $region28: #{mlp_2hidden_forward.1} parent=1 // pred_region
      _
    $region29: #{mlp_2hidden_forward.1} parent=1 // pred_fallthru
      _
    // Predicated region
    $region30: #{mlp_2hidden_forward.1} parent=1 // pred_check
      _
    $region31: #{mlp_2hidden_forward.1} parent=1 // pred_check_branch
      %38 = sbr.rel (0) target = $region33
    $region32: #{mlp_2hidden_forward.1} parent=1 // pred_region
      %39 = dma.done [#allocation3], 1024
    $region33: #{mlp_2hidden_forward.1} parent=1 // pred_fallthru
      _
    %v41 = vld [vmem:[%s0] sm:$0xf]
    %v42 = vld [vmem:[%s0 + $0x4] sm:$0xf]
    %v43 = vld [vmem:[%s1] sm:$0xff]
    %v44 = vld [vmem:[%s1 + $0x8] sm:$0xff]
    %v45 = vld [vmem:[%s1 + $0x10] sm:$0xff]
    %v46 = vld [vmem:[%s1 + $0x18] sm:$0xff]
    %v47 = vld [vmem:[%s1 + $0x20] sm:$0xff]
    %v48 = vld [vmem:[%s1 + $0x28] sm:$0xff]
    %v49 = vld [vmem:[%s1 + $0x30] sm:$0xff]
    %v50 = vld [vmem:[%s1 + $0x38] sm:$0xff]
    %v51 = vld [vmem:[%s2] sm:$0xf]
    %v53 = vlaneseq
    %v54 = vshrl.u32 %v53, 7
    %v55 = vsub.s32 0, %v54
    %v56 = vrot.slane %v51, %v55
    %v57 = vlaneseq
    %v58 = vshrl.u32 %v57, 7
    %v59 = vsub.s32 1, %v58
    %v60 = vrot.slane %v51, %v59
    %v61 = vlaneseq
    %v62 = vshrl.u32 %v61, 7
    %v63 = vsub.s32 2, %v62
    %v64 = vrot.slane %v51, %v63
    %v65 = vlaneseq
    %v66 = vshrl.u32 %v65, 7
    %v67 = vsub.s32 3, %v66
    %v68 = vrot.slane %v51, %v67
    %v75 = vunpack.c.l.b16 %v41
    %v76 = vunpack.c.l.b16 %v42
    %v77 = vpack.c.b16 %v76, %v75
    %v86 = vunpack.c.l.b16 %v43
    %v87 = vunpack.c.h.b16 %v43
    %v88 = vunpack.c.l.b16 %v44
    %v89 = vunpack.c.h.b16 %v44
    %v90 = vunpack.c.l.b16 %v45
    %v91 = vunpack.c.h.b16 %v45
    %v92 = vunpack.c.l.b16 %v46
    %v93 = vunpack.c.h.b16 %v46
    %v94 = vunpack.c.l.b16 %v47
    %v95 = vunpack.c.h.b16 %v47
    %v96 = vunpack.c.l.b16 %v48
    %v97 = vunpack.c.h.b16 %v48
    %v98 = vunpack.c.l.b16 %v49
    %v99 = vunpack.c.h.b16 %v49
    %v100 = vunpack.c.l.b16 %v50
    %v101 = vunpack.c.h.b16 %v50
    %v102 = vpack.c.b16 %v90, %v86
    %v103 = vpack.c.b16 %v91, %v87
    %v104 = vpack.c.b16 %v92, %v88
    %v105 = vpack.c.b16 %v93, %v89
    %v106 = vpack.c.b16 %v98, %v94
    %v107 = vpack.c.b16 %v99, %v95
    %v108 = vpack.c.b16 %v100, %v96
    %v109 = vpack.c.b16 %v101, %v97
    %vm118 = vcmask 261120
    %v120 = vsel %vm118, %v77, 0
    %122 = vmatprep.subr.bf16.mxu0 %v103
    %123 = vmatpush1.bf16.msra.mxu0 %v102
    %124 = vmatprep.subr.bf16.mxu0 %v107
    %125 = vmatpush1.bf16.msra.mxu0 %v106
    %126 = vmatprep.subr.bf16.mxu0 0
    %127 = vmatpush1.bf16.msra.mxu0 0
    %128 = vmatprep.subr.bf16.mxu0 0
    %129 = vmatpush1.bf16.msra.mxu0 0
    %130 = vmatprep.subr.bf16.mxu0 0
    %131 = vmatpush1.bf16.msra.mxu0 0
    %132 = vmatprep.subr.bf16.mxu0 0
    %133 = vmatpush1.bf16.msra.mxu0 0
    %134 = vmatprep.subr.bf16.mxu0 0
    %135 = vmatpush1.bf16.msra.mxu0 0
    %136 = vmatprep.subr.bf16.mxu0 0
    %137 = vmatpush1.bf16.msra.mxu0 0
    %138 = vmatprep.subr.bf16.mxu0 0
    %139 = vmatpush1.bf16.msra.mxu0 0
    %140 = vmatprep.subr.bf16.mxu0 0
    %141 = vmatpush1.bf16.msra.mxu0 0
    %142 = vmatprep.subr.bf16.mxu0 0
    %143 = vmatpush1.bf16.msra.mxu0 0
    %144 = vmatprep.subr.bf16.mxu0 0
    %145 = vmatpush1.bf16.msra.mxu0 0
    %146 = vmatprep.subr.bf16.mxu0 0
    %147 = vmatpush1.bf16.msra.mxu0 0
    %148 = vmatprep.subr.bf16.mxu0 0
    %149 = vmatpush1.bf16.msra.mxu0 0
    %150 = vmatprep.subr.bf16.mxu0 0
    %151 = vmatpush1.bf16.msra.mxu0 0
    %152 = vmatprep.subr.bf16.mxu0 0
    %153 = vmatpush1.bf16.msra.mxu0 0
    %154 = vmatprep.mubr.bf16.mxu0 0
    %155 = vmatmul.mubr.bf16.gmra.mrb[0].mxu0 %v120
    %v156 = vpop.f32.mrb[0].mxu0
    %v157 = vadd.f32 %v56, %v156
    %v158 = vpop.f32.mrb[0].mxu0
    %v159 = vadd.f32 %v60, %v158
    %v160 = vpop.f32.mrb[0].mxu0
    %v161 = vadd.f32 %v56, %v160
    %v162 = vpop.f32.mrb[0].mxu0
    %v163 = vadd.f32 %v60, %v162
    %164 = vdwg.mxu0
    %165 = vmatprep.subr.bf16.mxu0 %v105
    %166 = vmatpush1.bf16.msra.mxu0 %v104
    %167 = vmatprep.subr.bf16.mxu0 %v109
    %168 = vmatpush1.bf16.msra.mxu0 %v108
    %169 = vmatprep.subr.bf16.mxu0 0
    %170 = vmatpush1.bf16.msra.mxu0 0
    %171 = vmatprep.subr.bf16.mxu0 0
    %172 = vmatpush1.bf16.msra.mxu0 0
    %173 = vmatprep.subr.bf16.mxu0 0
    %174 = vmatpush1.bf16.msra.mxu0 0
    %175 = vmatprep.subr.bf16.mxu0 0
    %176 = vmatpush1.bf16.msra.mxu0 0
    %177 = vmatprep.subr.bf16.mxu0 0
    %178 = vmatpush1.bf16.msra.mxu0 0
    %179 = vmatprep.subr.bf16.mxu0 0
    %180 = vmatpush1.bf16.msra.mxu0 0
    %181 = vmatprep.subr.bf16.mxu0 0
    %182 = vmatpush1.bf16.msra.mxu0 0
    %183 = vmatprep.subr.bf16.mxu0 0
    %184 = vmatpush1.bf16.msra.mxu0 0
    %185 = vmatprep.subr.bf16.mxu0 0
    %186 = vmatpush1.bf16.msra.mxu0 0
    %187 = vmatprep.subr.bf16.mxu0 0
    %188 = vmatpush1.bf16.msra.mxu0 0
    %189 = vmatprep.subr.bf16.mxu0 0
    %190 = vmatpush1.bf16.msra.mxu0 0
    %191 = vmatprep.subr.bf16.mxu0 0
    %192 = vmatpush1.bf16.msra.mxu0 0
    %193 = vmatprep.subr.bf16.mxu0 0
    %194 = vmatpush1.bf16.msra.mxu0 0
    %195 = vmatprep.subr.bf16.mxu0 0
    %196 = vmatpush1.bf16.msra.mxu0 0
    %197 = vmatprep.mubr.bf16.mxu0 0
    %198 = vmatmul.mubr.bf16.gmra.mrb[0].mxu0 %v120
    %v199 = vpop.f32.mrb[0].mxu0
    %v200 = vadd.f32 %v64, %v199
    %v201 = vpop.f32.mrb[0].mxu0
    %v202 = vadd.f32 %v68, %v201
    %v203 = vpop.f32.mrb[0].mxu0
    %v204 = vadd.f32 %v64, %v203
    %v205 = vpop.f32.mrb[0].mxu0
    %v206 = vadd.f32 %v68, %v205
    %207 = vdwg.mxu0
    %v208 = vmax.f32 %v157, 0.0
    %v209 = vmax.f32 %v159, 0.0
    %v210 = vmax.f32 %v200, 0.0
    %v211 = vmax.f32 %v202, 0.0
    %v212 = vmax.f32 %v161, 0.0
    %v213 = vmax.f32 %v163, 0.0
    %v214 = vmax.f32 %v204, 0.0
    %v215 = vmax.f32 %v206, 0.0
    %v216 = vpack.c.bf16 %v212, %v208
    %v217 = vpack.c.bf16 %v213, %v209
    %v218 = vpack.c.bf16 %v214, %v210
    %v219 = vpack.c.bf16 %v215, %v211
    %v220 = vld [vmem:[%s3] sm:$0xf]
    %v221 = vld [vmem:[%s3 + $0x4] sm:$0xf]
    %v222 = vld [vmem:[%s3 + $0x8] sm:$0xf]
    %v223 = vld [vmem:[%s3 + $0xc] sm:$0xf]
    %v224 = vld [vmem:[%s3 + $0x10] sm:$0xf]
    %v225 = vld [vmem:[%s3 + $0x14] sm:$0xf]
    %v226 = vld [vmem:[%s3 + $0x18] sm:$0xf]
    %v227 = vld [vmem:[%s3 + $0x1c] sm:$0xf]
    %v228 = vld [vmem:[%s3 + $0x20] sm:$0xf]
    %v229 = vld [vmem:[%s3 + $0x24] sm:$0xf]
    %v230 = vld [vmem:[%s3 + $0x28] sm:$0xf]
    %v231 = vld [vmem:[%s3 + $0x2c] sm:$0xf]
    %v232 = vld [vmem:[%s3 + $0x30] sm:$0xf]
    %v233 = vld [vmem:[%s3 + $0x34] sm:$0xf]
    %v234 = vld [vmem:[%s3 + $0x38] sm:$0xf]
    %v235 = vld [vmem:[%s3 + $0x3c] sm:$0xf]
    %v236 = vld [vmem:[%s3 + $0x40] sm:$0xf]
    %v237 = vld [vmem:[%s3 + $0x44] sm:$0xf]
    %v238 = vld [vmem:[%s3 + $0x48] sm:$0xf]
    %v239 = vld [vmem:[%s3 + $0x4c] sm:$0xf]
    %v240 = vld [vmem:[%s3 + $0x50] sm:$0xf]
    %v241 = vld [vmem:[%s3 + $0x54] sm:$0xf]
    %v242 = vld [vmem:[%s3 + $0x58] sm:$0xf]
    %v243 = vld [vmem:[%s3 + $0x5c] sm:$0xf]
    %v244 = vld [vmem:[%s3 + $0x60] sm:$0xf]
    %v245 = vld [vmem:[%s3 + $0x64] sm:$0xf]
    %v246 = vld [vmem:[%s3 + $0x68] sm:$0xf]
    %v247 = vld [vmem:[%s3 + $0x6c] sm:$0xf]
    %v248 = vld [vmem:[%s3 + $0x70] sm:$0xf]
    %v249 = vld [vmem:[%s3 + $0x74] sm:$0xf]
    %v250 = vld [vmem:[%s3 + $0x78] sm:$0xf]
    %v251 = vld [vmem:[%s3 + $0x7c] sm:$0xf]
    %v252 = vld [vmem:[%s3 + $0x80] sm:$0xf]
    %v253 = vld [vmem:[%s3 + $0x84] sm:$0xf]
    %v254 = vld [vmem:[%s3 + $0x88] sm:$0xf]
    %v255 = vld [vmem:[%s3 + $0x8c] sm:$0xf]
    %v256 = vld [vmem:[%s3 + $0x90] sm:$0xf]
    %v257 = vld [vmem:[%s3 + $0x94] sm:$0xf]
    %v258 = vld [vmem:[%s3 + $0x98] sm:$0xf]
    %v259 = vld [vmem:[%s3 + $0x9c] sm:$0xf]
    %v260 = vld [vmem:[%s3 + $0xa0] sm:$0xf]
    %v261 = vld [vmem:[%s3 + $0xa4] sm:$0xf]
    %v262 = vld [vmem:[%s3 + $0xa8] sm:$0xf]
    %v263 = vld [vmem:[%s3 + $0xac] sm:$0xf]
    %v264 = vld [vmem:[%s3 + $0xb0] sm:$0xf]
    %v265 = vld [vmem:[%s3 + $0xb4] sm:$0xf]
    %v266 = vld [vmem:[%s3 + $0xb8] sm:$0xf]
    %v267 = vld [vmem:[%s3 + $0xbc] sm:$0xf]
    %v268 = vld [vmem:[%s3 + $0xc0] sm:$0xf]
    %v269 = vld [vmem:[%s3 + $0xc4] sm:$0xf]
    %v270 = vld [vmem:[%s3 + $0xc8] sm:$0xf]
    %v271 = vld [vmem:[%s3 + $0xcc] sm:$0xf]
    %v272 = vld [vmem:[%s3 + $0xd0] sm:$0xf]
    %v273 = vld [vmem:[%s3 + $0xd4] sm:$0xf]
    %v274 = vld [vmem:[%s3 + $0xd8] sm:$0xf]
    %v275 = vld [vmem:[%s3 + $0xdc] sm:$0xf]
    %v276 = vld [vmem:[%s3 + $0xe0] sm:$0xf]
    %v277 = vld [vmem:[%s3 + $0xe4] sm:$0xf]
    %v278 = vld [vmem:[%s3 + $0xe8] sm:$0xf]
    %v279 = vld [vmem:[%s3 + $0xec] sm:$0xf]
    %v280 = vld [vmem:[%s3 + $0xf0] sm:$0xf]
    %v281 = vld [vmem:[%s3 + $0xf4] sm:$0xf]
    %v282 = vld [vmem:[%s3 + $0xf8] sm:$0xf]
    %v283 = vld [vmem:[%s3 + $0xfc] sm:$0xf]
    %v284 = vld [vmem:[%s4] sm:$0x1]
    %v286 = vlaneseq
    %v287 = vshrl.u32 %v286, 7
    %v288 = vsub.s32 0, %v287
    %v289 = vrot.slane %v284, %v288
    %v355 = vunpack.c.l.b16 %v220
    %v356 = vunpack.c.l.b16 %v221
    %v357 = vunpack.c.l.b16 %v222
    %v358 = vunpack.c.l.b16 %v223
    %v359 = vunpack.c.l.b16 %v224
    %v360 = vunpack.c.l.b16 %v225
    %v361 = vunpack.c.l.b16 %v226
    %v362 = vunpack.c.l.b16 %v227
    %v363 = vunpack.c.l.b16 %v228
    %v364 = vunpack.c.l.b16 %v229
    %v365 = vunpack.c.l.b16 %v230
    %v366 = vunpack.c.l.b16 %v231
    %v367 = vunpack.c.l.b16 %v232
    %v368 = vunpack.c.l.b16 %v233
    %v369 = vunpack.c.l.b16 %v234
    %v370 = vunpack.c.l.b16 %v235
    %v371 = vunpack.c.l.b16 %v236
    %v372 = vunpack.c.l.b16 %v237
    %v373 = vunpack.c.l.b16 %v238
    %v374 = vunpack.c.l.b16 %v239
    %v375 = vunpack.c.l.b16 %v240
    %v376 = vunpack.c.l.b16 %v241
    %v377 = vunpack.c.l.b16 %v242
    %v378 = vunpack.c.l.b16 %v243
    %v379 = vunpack.c.l.b16 %v244
    %v380 = vunpack.c.l.b16 %v245
    %v381 = vunpack.c.l.b16 %v246
    %v382 = vunpack.c.l.b16 %v247
    %v383 = vunpack.c.l.b16 %v248
    %v384 = vunpack.c.l.b16 %v249
    %v385 = vunpack.c.l.b16 %v250
    %v386 = vunpack.c.l.b16 %v251
    %v387 = vunpack.c.l.b16 %v252
    %v388 = vunpack.c.l.b16 %v253
    %v389 = vunpack.c.l.b16 %v254
    %v390 = vunpack.c.l.b16 %v255
    %v391 = vunpack.c.l.b16 %v256
    %v392 = vunpack.c.l.b16 %v257
    %v393 = vunpack.c.l.b16 %v258
    %v394 = vunpack.c.l.b16 %v259
    %v395 = vunpack.c.l.b16 %v260
    %v396 = vunpack.c.l.b16 %v261
    %v397 = vunpack.c.l.b16 %v262
    %v398 = vunpack.c.l.b16 %v263
    %v399 = vunpack.c.l.b16 %v264
    %v400 = vunpack.c.l.b16 %v265
    %v401 = vunpack.c.l.b16 %v266
    %v402 = vunpack.c.l.b16 %v267
    %v403 = vunpack.c.l.b16 %v268
    %v404 = vunpack.c.l.b16 %v269
    %v405 = vunpack.c.l.b16 %v270
    %v406 = vunpack.c.l.b16 %v271
    %v407 = vunpack.c.l.b16 %v272
    %v408 = vunpack.c.l.b16 %v273
    %v409 = vunpack.c.l.b16 %v274
    %v410 = vunpack.c.l.b16 %v275
    %v411 = vunpack.c.l.b16 %v276
    %v412 = vunpack.c.l.b16 %v277
    %v413 = vunpack.c.l.b16 %v278
    %v414 = vunpack.c.l.b16 %v279
    %v415 = vunpack.c.l.b16 %v280
    %v416 = vunpack.c.l.b16 %v281
    %v417 = vunpack.c.l.b16 %v282
    %v418 = vunpack.c.l.b16 %v283
    %v419 = vpack.c.b16 %v356, %v355
    %v420 = vpack.c.b16 %v358, %v357
    %v421 = vpack.c.b16 %v360, %v359
    %v422 = vpack.c.b16 %v362, %v361
    %v423 = vpack.c.b16 %v364, %v363
    %v424 = vpack.c.b16 %v366, %v365
    %v425 = vpack.c.b16 %v368, %v367
    %v426 = vpack.c.b16 %v370, %v369
    %v427 = vpack.c.b16 %v372, %v371
    %v428 = vpack.c.b16 %v374, %v373
    %v429 = vpack.c.b16 %v376, %v375
    %v430 = vpack.c.b16 %v378, %v377
    %v431 = vpack.c.b16 %v380, %v379
    %v432 = vpack.c.b16 %v382, %v381
    %v433 = vpack.c.b16 %v384, %v383
    %v434 = vpack.c.b16 %v386, %v385
    %v435 = vpack.c.b16 %v388, %v387
    %v436 = vpack.c.b16 %v390, %v389
    %v437 = vpack.c.b16 %v392, %v391
    %v438 = vpack.c.b16 %v394, %v393
    %v439 = vpack.c.b16 %v396, %v395
    %v440 = vpack.c.b16 %v398, %v397
    %v441 = vpack.c.b16 %v400, %v399
    %v442 = vpack.c.b16 %v402, %v401
    %v443 = vpack.c.b16 %v404, %v403
    %v444 = vpack.c.b16 %v406, %v405
    %v445 = vpack.c.b16 %v408, %v407
    %v446 = vpack.c.b16 %v410, %v409
    %v447 = vpack.c.b16 %v412, %v411
    %v448 = vpack.c.b16 %v414, %v413
    %v449 = vpack.c.b16 %v416, %v415
    %v450 = vpack.c.b16 %v418, %v417
    %483 = vmatprep.subr.bf16.mxu0 0
    %484 = vmatpush1.bf16.msra.mxu0 %v419
    %485 = vmatprep.subr.bf16.mxu0 0
    %486 = vmatpush1.bf16.msra.mxu0 %v420
    %487 = vmatprep.subr.bf16.mxu0 0
    %488 = vmatpush1.bf16.msra.mxu0 %v421
    %489 = vmatprep.subr.bf16.mxu0 0
    %490 = vmatpush1.bf16.msra.mxu0 %v422
    %491 = vmatprep.subr.bf16.mxu0 0
    %492 = vmatpush1.bf16.msra.mxu0 %v423
    %493 = vmatprep.subr.bf16.mxu0 0
    %494 = vmatpush1.bf16.msra.mxu0 %v424
    %495 = vmatprep.subr.bf16.mxu0 0
    %496 = vmatpush1.bf16.msra.mxu0 %v425
    %497 = vmatprep.subr.bf16.mxu0 0
    %498 = vmatpush1.bf16.msra.mxu0 %v426
    %499 = vmatprep.subr.bf16.mxu0 0
    %500 = vmatpush1.bf16.msra.mxu0 %v427
    %501 = vmatprep.subr.bf16.mxu0 0
    %502 = vmatpush1.bf16.msra.mxu0 %v428
    %503 = vmatprep.subr.bf16.mxu0 0
    %504 = vmatpush1.bf16.msra.mxu0 %v429
    %505 = vmatprep.subr.bf16.mxu0 0
    %506 = vmatpush1.bf16.msra.mxu0 %v430
    %507 = vmatprep.subr.bf16.mxu0 0
    %508 = vmatpush1.bf16.msra.mxu0 %v431
    %509 = vmatprep.subr.bf16.mxu0 0
    %510 = vmatpush1.bf16.msra.mxu0 %v432
    %511 = vmatprep.subr.bf16.mxu0 0
    %512 = vmatpush1.bf16.msra.mxu0 %v433
    %513 = vmatprep.subr.bf16.mxu0 0
    %514 = vmatpush1.bf16.msra.mxu0 %v434
    %515 = vmatprep.mubr.bf16.mxu0 %v217
    %516 = vmatmul.mubr.bf16.gmra.mrb[0].mxu0 %v216
    %v517 = vpop.f32.mrb[0].mxu0
    %v518 = vadd.f32 %v289, %v517
    %v519 = vpop.f32.mrb[0].mxu0
    %v520 = vpop.f32.mrb[0].mxu0
    %v521 = vadd.f32 %v289, %v520
    %v522 = vpop.f32.mrb[0].mxu0
    %523 = vdwg.mxu0
    %524 = vmatprep.subr.bf16.mxu0 0
    %525 = vmatpush1.bf16.msra.mxu0 %v435
    %526 = vmatprep.subr.bf16.mxu0 0
    %527 = vmatpush1.bf16.msra.mxu0 %v436
    %528 = vmatprep.subr.bf16.mxu0 0
    %529 = vmatpush1.bf16.msra.mxu0 %v437
    %530 = vmatprep.subr.bf16.mxu0 0
    %531 = vmatpush1.bf16.msra.mxu0 %v438
    %532 = vmatprep.subr.bf16.mxu0 0
    %533 = vmatpush1.bf16.msra.mxu0 %v439
    %534 = vmatprep.subr.bf16.mxu0 0
    %535 = vmatpush1.bf16.msra.mxu0 %v440
    %536 = vmatprep.subr.bf16.mxu0 0
    %537 = vmatpush1.bf16.msra.mxu0 %v441
    %538 = vmatprep.subr.bf16.mxu0 0
    %539 = vmatpush1.bf16.msra.mxu0 %v442
    %540 = vmatprep.subr.bf16.mxu0 0
    %541 = vmatpush1.bf16.msra.mxu0 %v443
    %542 = vmatprep.subr.bf16.mxu0 0
    %543 = vmatpush1.bf16.msra.mxu0 %v444
    %544 = vmatprep.subr.bf16.mxu0 0
    %545 = vmatpush1.bf16.msra.mxu0 %v445
    %546 = vmatprep.subr.bf16.mxu0 0
    %547 = vmatpush1.bf16.msra.mxu0 %v446
    %548 = vmatprep.subr.bf16.mxu0 0
    %549 = vmatpush1.bf16.msra.mxu0 %v447
    %550 = vmatprep.subr.bf16.mxu0 0
    %551 = vmatpush1.bf16.msra.mxu0 %v448
    %552 = vmatprep.subr.bf16.mxu0 0
    %553 = vmatpush1.bf16.msra.mxu0 %v449
    %554 = vmatprep.subr.bf16.mxu0 0
    %555 = vmatpush1.bf16.msra.mxu0 %v450
    %556 = vmatprep.mubr.bf16.mxu0 %v219
    %557 = vmatmul.mubr.bf16.gmra.mrb[0].mxu0 %v218
    %v558 = vpop.f32.mrb[0].mxu0
    %v559 = vadd.f32 %v518, %v558
    %v560 = vpop.f32.mrb[0].mxu0
    %v561 = vpop.f32.mrb[0].mxu0
    %v562 = vadd.f32 %v521, %v561
    %v563 = vpop.f32.mrb[0].mxu0
    %564 = vdwg.mxu0
    %v565 = vmax.f32 %v559, 0.0
    %v566 = vmax.f32 %v562, 0.0
    %v567 = vpack.c.bf16 %v566, %v565
    %v568 = vld [vmem:[#allocation2] sm:$0xf]
    %v569 = vld [vmem:[#allocation2 + $0x4] sm:$0xf]
    %v570 = vld [vmem:[#allocation2 + $0x8] sm:$0xf]
    %v571 = vld [vmem:[#allocation2 + $0xc] sm:$0xf]
    %v572 = vld [vmem:[#allocation2 + $0x10] sm:$0xf]
    %v573 = vld [vmem:[#allocation2 + $0x14] sm:$0xf]
    %v574 = vld [vmem:[#allocation2 + $0x18] sm:$0xf]
    %v575 = vld [vmem:[#allocation2 + $0x1c] sm:$0xf]
    %v576 = vld [vmem:[#allocation2 + $0x20] sm:$0xf]
    %v577 = vld [vmem:[#allocation2 + $0x24] sm:$0xf]
    %v578 = vld [vmem:[#allocation2 + $0x28] sm:$0xf]
    %v579 = vld [vmem:[#allocation2 + $0x2c] sm:$0xf]
    %v580 = vld [vmem:[#allocation2 + $0x30] sm:$0xf]
    %v581 = vld [vmem:[#allocation2 + $0x34] sm:$0xf]
    %v582 = vld [vmem:[#allocation2 + $0x38] sm:$0xf]
    %v583 = vld [vmem:[#allocation2 + $0x3c] sm:$0xf]
    %v584 = vld [vmem:[%s6] sm:$0x1]
    %v586 = vlaneseq
    %v587 = vshrl.u32 %v586, 7
    %v588 = vsub.s32 0, %v587
    %v589 = vrot.slane %v584, %v588
    %v607 = vunpack.c.l.b16 %v568
    %v608 = vunpack.c.l.b16 %v569
    %v609 = vunpack.c.l.b16 %v570
    %v610 = vunpack.c.l.b16 %v571
    %v611 = vunpack.c.l.b16 %v572
    %v612 = vunpack.c.l.b16 %v573
    %v613 = vunpack.c.l.b16 %v574
    %v614 = vunpack.c.l.b16 %v575
    %v615 = vunpack.c.l.b16 %v576
    %v616 = vunpack.c.l.b16 %v577
    %v617 = vunpack.c.l.b16 %v578
    %v618 = vunpack.c.l.b16 %v579
    %v619 = vunpack.c.l.b16 %v580
    %v620 = vunpack.c.l.b16 %v581
    %v621 = vunpack.c.l.b16 %v582
    %v622 = vunpack.c.l.b16 %v583
    %v623 = vpack.c.b16 %v608, %v607
    %v624 = vpack.c.b16 %v610, %v609
    %v625 = vpack.c.b16 %v612, %v611
    %v626 = vpack.c.b16 %v614, %v613
    %v627 = vpack.c.b16 %v616, %v615
    %v628 = vpack.c.b16 %v618, %v617
    %v629 = vpack.c.b16 %v620, %v619
    %v630 = vpack.c.b16 %v622, %v621
    %639 = vmatprep.subr.bf16.mxu0 0
    %640 = vmatpush1.bf16.msra.mxu0 %v623
    %641 = vmatprep.subr.bf16.mxu0 0
    %642 = vmatpush1.bf16.msra.mxu0 %v624
    %643 = vmatprep.subr.bf16.mxu0 0
    %644 = vmatpush1.bf16.msra.mxu0 %v625
    %645 = vmatprep.subr.bf16.mxu0 0
    %646 = vmatpush1.bf16.msra.mxu0 %v626
    %647 = vmatprep.subr.bf16.mxu0 0
    %648 = vmatpush1.bf16.msra.mxu0 %v627
    %649 = vmatprep.subr.bf16.mxu0 0
    %650 = vmatpush1.bf16.msra.mxu0 %v628
    %651 = vmatprep.subr.bf16.mxu0 0
    %652 = vmatpush1.bf16.msra.mxu0 %v629
    %653 = vmatprep.subr.bf16.mxu0 0
    %654 = vmatpush1.bf16.msra.mxu0 %v630
    %655 = vmatprep.subr.bf16.mxu0 0
    %656 = vmatpush1.bf16.msra.mxu0 0
    %657 = vmatprep.subr.bf16.mxu0 0
    %658 = vmatpush1.bf16.msra.mxu0 0
    %659 = vmatprep.subr.bf16.mxu0 0
    %660 = vmatpush1.bf16.msra.mxu0 0
    %661 = vmatprep.subr.bf16.mxu0 0
    %662 = vmatpush1.bf16.msra.mxu0 0
    %663 = vmatprep.subr.bf16.mxu0 0
    %664 = vmatpush1.bf16.msra.mxu0 0
    %665 = vmatprep.subr.bf16.mxu0 0
    %666 = vmatpush1.bf16.msra.mxu0 0
    %667 = vmatprep.subr.bf16.mxu0 0
    %668 = vmatpush1.bf16.msra.mxu0 0
    %669 = vmatprep.subr.bf16.mxu0 0
    %670 = vmatpush1.bf16.msra.mxu0 0
    %671 = vmatprep.mubr.bf16.mxu0 0
    %672 = vmatmul.mubr.bf16.gmra.mrb[0].mxu0 %v567
    %v673 = vpop.f32.mrb[0].mxu0
    %v674 = vadd.f32 %v589, %v673
    %v675 = vpop.f32.mrb[0].mxu0
    %v676 = vpop.f32.mrb[0].mxu0
    %v677 = vadd.f32 %v589, %v676
    %v678 = vpop.f32.mrb[0].mxu0
    %679 = vdwg.mxu0
    %v680 = vpack.c.bf16 %v677, %v674
    %v682 = vunpack.c.l.b16 %v680
    %v683 = vunpack.c.h.b16 %v680
    %v684 = vpack.c.b16 %v682, %v682
    %v685 = vpack.c.b16 %v683, %v683
    %688 = vst [vmem:[%s7] sm:$0xf] %v684
    %689 = vst [vmem:[%s7 + $0x4] sm:$0xf] %v685
    // Predicated region
    $region34: #{mlp_2hidden_forward.1} parent=1 // pred_check
      _
    $region35: #{mlp_2hidden_forward.1} parent=1 // pred_check_branch
      %691 = sbr.rel (0) target = $region37
    $region36: #{mlp_2hidden_forward.1} parent=1 // pred_region
      _
    $region37: #{mlp_2hidden_forward.1} parent=1 // pred_fallthru
      _
    // Predicated region
    $region38: #{mlp_2hidden_forward.1} parent=1 // pred_check
      _
    $region39: #{mlp_2hidden_forward.1} parent=1 // pred_check_branch
      %693 = sbr.rel (0) target = $region41
    $region40: #{mlp_2hidden_forward.1} parent=1 // pred_region
      _
    $region41: #{mlp_2hidden_forward.1} parent=1 // pred_fallthru
      _
    %694 = vsyncpa [#allocation3], 1

</llo_original>
